<compile_context>
chip_gen: v7x
topology: tpu7x:2x2x1
jax: 0.10.0
libtpu: 0.0.40
codegen_flags: <defaults>
</compile_context>

<pallas_src>
import math

import jax
import jax.numpy as jnp
import numpy as np
from jax import lax
from jax.experimental import pallas as pl
from jax.experimental.pallas import tpu as pltpu


def _fused_kernel(w_ref, p_ref, b_ref, o_ref):
    # w_ref: (OC, K) bf16   p_ref: (K, M_pad) bf16   b_ref: (OC, 1) f32
    # o_ref: (OC, M_pad) f32
    acc = jnp.dot(w_ref[...], p_ref[...], preferred_element_type=jnp.float32)
    acc = acc + b_ref[...]                      # broadcast add on VPU (f32)
    o_ref[...] = jnp.maximum(acc, 0.0).astype(o_ref.dtype)


@jax.jit
def fused_conv_add_relu(x1, x2, x3, params):
    (w1, b1), (w2, b2), (w3, b3) = params
    N, _, H, W = x1.shape
    OC = w1.shape[0]
    # Space-to-depth im2col below requires even spatial dims (H+2 == 2*OH).
    assert H % 2 == 0 and W % 2 == 0, "im2col path requires even H, W"
    assert x1.shape[2:] == x2.shape[2:] == x3.shape[2:], "spatial sizes must match"
    assert x1.shape[0] == x2.shape[0] == x3.shape[0]

    # --- single im2col over all three inputs (channel concat, bf16) ---
    x = jnp.concatenate([x1, x2, x3], axis=1).astype(jnp.bfloat16)  # (N, Csum, H, W)
    C = x.shape[1]
    xp = jnp.pad(x, ((0, 0), (0, 0), (1, 1), (1, 1)))
    OH, OW = (H + 2) // 2, (W + 2) // 2
    xt = xp.reshape(N, C, OH, 2, OW, 2).transpose(1, 3, 5, 0, 2, 4)  # (C,kh,kw,N,OH,OW)
    M = N * OH * OW
    Pt = xt.reshape(C * 4, M)                                        # (K, M), K = 4*Csum

    M_pad = pl.cdiv(M, 128) * 128                                    # lane-dense output
    Pt = jnp.pad(Pt, ((0, 0), (0, M_pad - M)))

    # --- stacked weights; row ordering (c, kh, kw) matches Pt ---
    Wt = jnp.concatenate([w1, w2, w3], axis=1).astype(jnp.bfloat16).reshape(OC, -1)
    bias = (b1 + b2 + b3).astype(jnp.float32).reshape(OC, 1)
    K = Wt.shape[1]

    cost = pl.CostEstimate(
        flops=2 * OC * K * M_pad,
        transcendentals=0,
        bytes_accessed=Wt.size * 2 + Pt.size * 2 + bias.size * 4 + OC * M_pad * 4,
    )

    out = pl.pallas_call(
        _fused_kernel,
        out_shape=jax.ShapeDtypeStruct((OC, M_pad), jnp.float32),
        in_specs=[
            pl.BlockSpec(memory_space=pltpu.MemorySpace.VMEM),
            pl.BlockSpec(memory_space=pltpu.MemorySpace.VMEM),
            pl.BlockSpec(memory_space=pltpu.MemorySpace.VMEM),
        ],
        out_specs=pl.BlockSpec(memory_space=pltpu.MemorySpace.VMEM),
        compiler_params=pltpu.CompilerParams(
            allow_input_fusion=[True, True, True],
        ),
        cost_estimate=cost,
    )(Wt, Pt, bias)

    out = out[:, :M].reshape(OC, N, OH, OW)                          # (OC, N, OH, OW)
    return out.transpose(1, 0, 2, 3)                                 # NCHW


def _init_conv_params(key, in_ch, out_ch, k=2):
    kw, kb = jax.random.split(key)
    fan_in = in_ch * k * k
    bound = 1.0 / math.sqrt(fan_in)
    w = jax.random.uniform(kw, (out_ch, in_ch, k, k), jnp.float32, -bound, bound)
    b = jax.random.uniform(kb, (out_ch,), jnp.float32, -bound, bound)
    return w, b


def _ref_forward(x1, x2, x3, params):
    def conv(x, w, b):
        y = lax.conv_general_dilated(
            x, w, window_strides=(2, 2), padding=((1, 1), (1, 1)),
            dimension_numbers=("NCHW", "OIHW", "NCHW"))
        return y + b.reshape(1, -1, 1, 1)

    (w1, b1), (w2, b2), (w3, b3) = params
    v4 = conv(x1, w1, b1) + conv(x2, w2, b2) + conv(x3, w3, b3)
    return jnp.maximum(v4, 0.0)


if __name__ == "__main__":
    key = jax.random.PRNGKey(0)
    k1, k2, k3, kp1, kp2, kp3 = jax.random.split(key, 6)

    N, H, W = 2, 16, 16
    x1 = jax.random.normal(k1, (N, 3, H, W), jnp.float32)
    x2 = jax.random.normal(k2, (N, 4, H, W), jnp.float32)
    x3 = jax.random.normal(k3, (N, 5, H, W), jnp.float32)

    params = (
        _init_conv_params(kp1, 3, 12),   # module's self.conv (see TODO above)
        _init_conv_params(kp2, 4, 12),   # self.conv1
        _init_conv_params(kp3, 5, 12),   # self.conv2
    )

    out = jax.block_until_ready(fused_conv_add_relu(x1, x2, x3, params))
    ref = jax.block_until_ready(_ref_forward(x1, x2, x3, params))

    assert out.shape == (N, 12, H // 2 + 1, W // 2 + 1), out.shape
    # Tolerance slightly relaxed vs the pure-f32 version: MXU operands are bf16
    # (accumulation stays f32), reference is computed in full f32.
    np.testing.assert_allclose(np.asarray(out), np.asarray(ref), rtol=2e-2, atol=2e-2)
    print("KERNEL_OK")
</pallas_src>

<mosaic_0001>
module attributes {stable_mosaic.version = 11 : i64} {
  func.func @_fused_kernel(%arg0: memref<12x48xbf16, #tpu.memory_space<vmem>>, %arg1: memref<48x256xbf16, #tpu.memory_space<vmem>>, %arg2: memref<12x1xf32, #tpu.memory_space<vmem>>, %arg3: memref<12x256xf32, #tpu.memory_space<vmem>>) attributes {dimension_semantics = [], scalar_prefetch = 0 : i64, scratch_operands = 0 : i64, tpu.core_type = #tpu.core_type<tc>} {
    %c0 = arith.constant 0 : index
    %c0_0 = arith.constant 0 : index
    %0 = vector.load %arg0[%c0, %c0_0] : memref<12x48xbf16, #tpu.memory_space<vmem>>, vector<12x48xbf16>
    %c0_1 = arith.constant 0 : index
    %c0_2 = arith.constant 0 : index
    %1 = vector.load %arg1[%c0_1, %c0_2] : memref<48x256xbf16, #tpu.memory_space<vmem>>, vector<48x256xbf16>
    %cst = arith.constant dense<0.000000e+00> : vector<12x256xf32>
    %2 = tpu.matmul %0, %1, %cst {dimension_numbers = #tpu.dot_dimension_numbers<[1], [0], [0], [1], [0, 0, 1, 1], [], []>} : vector<12x48xbf16>, vector<48x256xbf16>, vector<12x256xf32> -> vector<12x256xf32>
    %c0_3 = arith.constant 0 : index
    %c0_4 = arith.constant 0 : index
    %3 = vector.load %arg2[%c0_3, %c0_4] : memref<12x1xf32, #tpu.memory_space<vmem>>, vector<12x1xf32>
    %4 = vector.broadcast %3 : vector<12x1xf32> to vector<12x256xf32>
    %5 = arith.addf %2, %4 : vector<12x256xf32>
    %cst_5 = arith.constant 0.000000e+00 : f32
    %6 = vector.broadcast %cst_5 : f32 to vector<12x256xf32>
    %7 = arith.maximumf %5, %6 : vector<12x256xf32>
    %c0_6 = arith.constant 0 : index
    %c0_7 = arith.constant 0 : index
    %8 = vector.load %arg3[%c0_6, %c0_7] : memref<12x256xf32, #tpu.memory_space<vmem>>, vector<12x256xf32>
    tpu.vector_store %arg3[%c0_6, %c0_7], %7 {strides = array<i32>} : memref<12x256xf32, #tpu.memory_space<vmem>>, vector<12x256xf32>,
    return
  }
}

</mosaic_0001>

<llo_original>
// kernel: fused_conv_add_relu.2
$region0: #{fused_conv_add_relu.2}
  #allocation0 [shape = 'u32[]', space=smem, size = 0x4, offset = 0x4, fixed_abs, tag = 'smem constant byte address 0x4 - core index']
  #allocation1 [shape = 'u32[144,128]{1,0:T(1,128)}', space=vmem, size = 0x12000, scoped, tag = 'internal scratch']
  #allocation2 [shape = 'u32[2048]{0}', space=vmem, size = 0x2000, scoped, tag = 'scoped memory for fused_conv_add_relu.2']
  #allocation3 [shape = 'u32[2048]{0}', space=vmem, size = 0x2000, scoped, tag = 'scoped memory for fused_conv_add_relu.2']
  #allocation4 [shape = 'u32[2048]{0}', space=vmem, size = 0x2000, scoped, tag = 'scoped memory for fused_conv_add_relu.2']
  #allocation5 [shape = 'u32[2048]{0}', space=vmem, size = 0x2000, scoped, tag = 'scoped memory for fused_conv_add_relu.2']
  #allocation6 [shape = 'u32[2048]{0}', space=vmem, size = 0x2000, scoped, tag = 'scoped memory for fused_conv_add_relu.2']
  %s0 = inlined_call_operand.vmem [shape: bf16[12,48], index: 0, kind: input, shape index: {}]
  %s1 = inlined_call_operand.vmem [shape: f32[12,1], index: 1, kind: input, shape index: {}]
  %s2 = inlined_call_operand.vmem [shape: bf16[48,162], index: 2, kind: input, shape index: {}]
  %s3 = inlined_call_operand.<no memory space> [shape: bf16[], index: 3, kind: input, shape index: {}]
  %s4 = inlined_call_operand.vmem [shape: f32[12,256], index: 4, kind: output, shape index: {}]
  %s5 = sld [smem:[#allocation0]]
  $region22: #{fused_conv_add_relu.2} parent=0
    _
  %s7 = ssub.s32 1, %s5
  %s8 = scalar_select 0, %s7, %s5
  %v9 = vstv %s3
  %v10 = vunpack.i.l.bf16 %v9
  %v12 = vunpack.i.h.bf16 %v9
  $region1: #{fused_conv_add_relu.2} parent=0
    #allocation7 [shape = 'u8[24576]{0}', space=vmem, size = 0x6000, dematerialized = true, scoped, tag = 'FusionAdapter Buffer %fusion.1 = bf16[48,256]{1,0:T(8,128)(2,1)} fusion(%param_2.4, %param_3.3), kind=kLoop, calls=%fused_computation.2.clone, metadata={op_name="jit(fused_conv_add_relu)/jit(_pad)/pad" stack_frame_id=11}']
    // Predicated region
    $region2: #{fused_conv_add_relu.2} parent=1 // pred_check
      _
    $region3: #{fused_conv_add_relu.2} parent=1 // pred_check_branch
      %15 = sbr.rel (0) target = $region5
    $region4: #{fused_conv_add_relu.2} parent=1 // pred_region
      _
    $region5: #{fused_conv_add_relu.2} parent=1 // pred_fallthru
      _
    // Predicated region
    $region6: #{fused_conv_add_relu.2} parent=1 // pred_check
      _
    $region7: #{fused_conv_add_relu.2} parent=1 // pred_check_branch
      %17 = sbr.rel (0) target = $region9
    $region8: #{fused_conv_add_relu.2} parent=1 // pred_region
      _
    $region9: #{fused_conv_add_relu.2} parent=1 // pred_fallthru
      _
    // Predicated region
    $region10: #{fused_conv_add_relu.2} parent=1 // pred_check
      _
    $region11: #{fused_conv_add_relu.2} parent=1 // pred_check_branch
      %19 = sbr.rel (0) target = $region13
    $region12: #{fused_conv_add_relu.2} parent=1 // pred_region
      _
    $region13: #{fused_conv_add_relu.2} parent=1 // pred_fallthru
      _
    %v20 = vld [vmem:[%s2] sm:$0xf]
    %v21 = vunpack.c.l.bf16 %v20
    %v22 = vunpack.c.h.bf16 %v20
    %v23 = vlaneseq
    %v24 = vand.u32 %v23, 127
    %vm26 = vcmp.lt.s32.totalorder %v24, 162
    %v27 = vsel %vm26, %v21, %v10
    %v28 = vpack.c.bf16 0.0, %v27
    %30 = vst [vmem:[#allocation7] sm:$0xf] %v28
    %s31 = scalar_lea.vmem %s2, 4
    %s33 = sor.u32 255, 127
    %s34 = sand.u32 %s33, 85
    %s35 = sshrl.u32 %s34, 1
    %s36 = sor.u32 %s34, %s35
    %s37 = sand.u32 51, %s36
    %s38 = sshrl.u32 %s37, 2
    %s39 = sor.u32 %s37, %s38
    %s40 = sand.u32 15, %s39
    %v41 = vld [vmem:[%s31] sm:%s40]
    %v42 = vunpack.c.l.bf16 %v41
    %v43 = vunpack.c.h.bf16 %v41
    %v44 = vlaneseq
    %v45 = vand.u32 %v44, 127
    %v46 = vadd.s32 %v45, 128
    %vm47 = vcmp.lt.s32.totalorder %v46, 162
    %v48 = vsel %vm47, %v42, %v10
    %s49 = scalar_lea.vmem [#allocation7], 4
    %v50 = vpack.c.bf16 0.0, %v48
    %52 = vst [vmem:[%s49] sm:$0xf] %v50
    %s53 = scalar_lea.vmem %s2, 8
    %v54 = vld [vmem:[%s53] sm:$0xf]
    %v55 = vunpack.c.l.bf16 %v54
    %v56 = vunpack.c.h.bf16 %v54
    %v57 = vlaneseq
    %v58 = vand.u32 %v57, 127
    %vm60 = vcmp.lt.s32.totalorder %v58, 162
    %v61 = vsel %vm60, %v55, %v10
    %s62 = scalar_lea.vmem [#allocation7], 8
    %v63 = vpack.c.bf16 0.0, %v61
    %65 = vst [vmem:[%s62] sm:$0xf] %v63
    %s66 = scalar_lea.vmem %s2, 12
    %s68 = sor.u32 255, 127
    %s69 = sand.u32 %s68, 85
    %s70 = sshrl.u32 %s69, 1
    %s71 = sor.u32 %s69, %s70
    %s72 = sand.u32 51, %s71
    %s73 = sshrl.u32 %s72, 2
    %s74 = sor.u32 %s72, %s73
    %s75 = sand.u32 15, %s74
    %v76 = vld [vmem:[%s66] sm:%s75]
    %v77 = vunpack.c.l.bf16 %v76
    %v78 = vunpack.c.h.bf16 %v76
    %v79 = vlaneseq
    %v80 = vand.u32 %v79, 127
    %v81 = vadd.s32 %v80, 128
    %vm82 = vcmp.lt.s32.totalorder %v81, 162
    %v83 = vsel %vm82, %v77, %v10
    %s84 = scalar_lea.vmem [#allocation7], 12
    %v85 = vpack.c.bf16 0.0, %v83
    %87 = vst [vmem:[%s84] sm:$0xf] %v85
    %s88 = scalar_lea.vmem %s2, 16
    %v89 = vld [vmem:[%s88] sm:$0xf]
    %v90 = vunpack.c.l.bf16 %v89
    %v91 = vunpack.c.h.bf16 %v89
    %v92 = vlaneseq
    %v93 = vand.u32 %v92, 127
    %vm95 = vcmp.lt.s32.totalorder %v93, 162
    %v96 = vsel %vm95, %v90, %v10
    %s97 = scalar_lea.vmem [#allocation7], 16
    %v98 = vpack.c.bf16 0.0, %v96
    %100 = vst [vmem:[%s97] sm:$0xf] %v98
    %s101 = scalar_lea.vmem %s2, 20
    %s103 = sor.u32 255, 127
    %s104 = sand.u32 %s103, 85
    %s105 = sshrl.u32 %s104, 1
    %s106 = sor.u32 %s104, %s105
    %s107 = sand.u32 51, %s106
    %s108 = sshrl.u32 %s107, 2
    %s109 = sor.u32 %s107, %s108
    %s110 = sand.u32 15, %s109
    %v111 = vld [vmem:[%s101] sm:%s110]
    %v112 = vunpack.c.l.bf16 %v111
    %v113 = vunpack.c.h.bf16 %v111
    %v114 = vlaneseq
    %v115 = vand.u32 %v114, 127
    %v116 = vadd.s32 %v115, 128
    %vm117 = vcmp.lt.s32.totalorder %v116, 162
    %v118 = vsel %vm117, %v112, %v10
    %s119 = scalar_lea.vmem [#allocation7], 20
    %v120 = vpack.c.bf16 0.0, %v118
    %122 = vst [vmem:[%s119] sm:$0xf] %v120
    %s123 = scalar_lea.vmem %s2, 24
    %v124 = vld [vmem:[%s123] sm:$0xf]
    %v125 = vunpack.c.l.bf16 %v124
    %v126 = vunpack.c.h.bf16 %v124
    %v127 = vlaneseq
    %v128 = vand.u32 %v127, 127
    %vm130 = vcmp.lt.s32.totalorder %v128, 162
    %v131 = vsel %vm130, %v125, %v10
    %s132 = scalar_lea.vmem [#allocation7], 24
    %v133 = vpack.c.bf16 0.0, %v131
    %135 = vst [vmem:[%s132] sm:$0xf] %v133
    %s136 = scalar_lea.vmem %s2, 28
    %s138 = sor.u32 255, 127
    %s139 = sand.u32 %s138, 85
    %s140 = sshrl.u32 %s139, 1
    %s141 = sor.u32 %s139, %s140
    %s142 = sand.u32 51, %s141
    %s143 = sshrl.u32 %s142, 2
    %s144 = sor.u32 %s142, %s143
    %s145 = sand.u32 15, %s144
    %v146 = vld [vmem:[%s136] sm:%s145]
    %v147 = vunpack.c.l.bf16 %v146
    %v148 = vunpack.c.h.bf16 %v146
    %v149 = vlaneseq
    %v150 = vand.u32 %v149, 127
    %v151 = vadd.s32 %v150, 128
    %vm152 = vcmp.lt.s32.totalorder %v151, 162
    %v153 = vsel %vm152, %v147, %v10
    %s154 = scalar_lea.vmem [#allocation7], 28
    %v155 = vpack.c.bf16 0.0, %v153
    %157 = vst [vmem:[%s154] sm:$0xf] %v155
    %s158 = scalar_lea.vmem %s2, 32
    %v159 = vld [vmem:[%s158] sm:$0xf]
    %v160 = vunpack.c.l.bf16 %v159
    %v161 = vunpack.c.h.bf16 %v159
    %v162 = vlaneseq
    %v163 = vand.u32 %v162, 127
    %vm165 = vcmp.lt.s32.totalorder %v163, 162
    %v166 = vsel %vm165, %v160, %v10
    %s167 = scalar_lea.vmem [#allocation7], 32
    %v168 = vpack.c.bf16 0.0, %v166
    %170 = vst [vmem:[%s167] sm:$0xf] %v168
    %s171 = scalar_lea.vmem %s2, 36
    %s173 = sor.u32 255, 127
    %s174 = sand.u32 %s173, 85
    %s175 = sshrl.u32 %s174, 1
    %s176 = sor.u32 %s174, %s175
    %s177 = sand.u32 51, %s176
    %s178 = sshrl.u32 %s177, 2
    %s179 = sor.u32 %s177, %s178
    %s180 = sand.u32 15, %s179
    %v181 = vld [vmem:[%s171] sm:%s180]
    %v182 = vunpack.c.l.bf16 %v181
    %v183 = vunpack.c.h.bf16 %v181
    %v184 = vlaneseq
    %v185 = vand.u32 %v184, 127
    %v186 = vadd.s32 %v185, 128
    %vm187 = vcmp.lt.s32.totalorder %v186, 162
    %v188 = vsel %vm187, %v182, %v10
    %s189 = scalar_lea.vmem [#allocation7], 36
    %v190 = vpack.c.bf16 0.0, %v188
    %192 = vst [vmem:[%s189] sm:$0xf] %v190
    %s193 = scalar_lea.vmem %s2, 40
    %v194 = vld [vmem:[%s193] sm:$0xf]
    %v195 = vunpack.c.l.bf16 %v194
    %v196 = vunpack.c.h.bf16 %v194
    %v197 = vlaneseq
    %v198 = vand.u32 %v197, 127
    %vm200 = vcmp.lt.s32.totalorder %v198, 162
    %v201 = vsel %vm200, %v195, %v10
    %s202 = scalar_lea.vmem [#allocation7], 40
    %v203 = vpack.c.bf16 0.0, %v201
    %205 = vst [vmem:[%s202] sm:$0xf] %v203
    %s206 = scalar_lea.vmem %s2, 44
    %s208 = sor.u32 255, 127
    %s209 = sand.u32 %s208, 85
    %s210 = sshrl.u32 %s209, 1
    %s211 = sor.u32 %s209, %s210
    %s212 = sand.u32 51, %s211
    %s213 = sshrl.u32 %s212, 2
    %s214 = sor.u32 %s212, %s213
    %s215 = sand.u32 15, %s214
    %v216 = vld [vmem:[%s206] sm:%s215]
    %v217 = vunpack.c.l.bf16 %v216
    %v218 = vunpack.c.h.bf16 %v216
    %v219 = vlaneseq
    %v220 = vand.u32 %v219, 127
    %v221 = vadd.s32 %v220, 128
    %vm222 = vcmp.lt.s32.totalorder %v221, 162
    %v223 = vsel %vm222, %v217, %v10
    %s224 = scalar_lea.vmem [#allocation7], 44
    %v225 = vpack.c.bf16 0.0, %v223
    %227 = vst [vmem:[%s224] sm:$0xf] %v225
    %v229 = vld [vmem:[%s0] sm:$0xf]
    %v230 = vld [vmem:[%s0 + $0x4] sm:$0x3]
    %v231 = vld [vmem:[#allocation7] sm:$0xff]
    %v232 = vld [vmem:[#allocation7 + $0x8] sm:$0xff]
    %v233 = vld [vmem:[#allocation7 + $0x10] sm:$0xff]
    %v234 = vld [vmem:[#allocation7 + $0x18] sm:$0xff]
    %v235 = vld [vmem:[#allocation7 + $0x20] sm:$0xff]
    %v236 = vld [vmem:[#allocation7 + $0x28] sm:$0xff]
    %v237 = vld [vmem:[%s1] sm:$0xff]
    %v238 = vld [vmem:[%s1 + $0x8] sm:$0xf]
    %240 = vset.pattern.permute.xlu0 0
    %241 = vperm.xlu0 %240, %v237
    %v242 = vpop.permute.xlu0 %241
    %245 = vset.pattern.permute.xlu0 0
    %246 = vperm.xlu0 %245, %v238
    %v247 = vpop.permute.xlu0 %246
    %v251 = vunpack.c.l.b16 %v229
    %v252 = vunpack.c.l.b16 %v230
    %v253 = vpack.c.b16 %v252, %v251
    %v260 = vunpack.c.l.b16 %v231
    %v261 = vunpack.c.h.b16 %v231
    %v262 = vunpack.c.l.b16 %v232
    %v263 = vunpack.c.h.b16 %v232
    %v264 = vunpack.c.l.b16 %v233
    %v265 = vunpack.c.h.b16 %v233
    %v266 = vunpack.c.l.b16 %v234
    %v267 = vunpack.c.h.b16 %v234
    %v268 = vunpack.c.l.b16 %v235
    %v269 = vunpack.c.h.b16 %v235
    %v270 = vunpack.c.l.b16 %v236
    %v271 = vunpack.c.h.b16 %v236
    %v272 = vpack.c.b16 %v262, %v260
    %v273 = vpack.c.b16 %v263, %v261
    %v274 = vpack.c.b16 %v266, %v264
    %v275 = vpack.c.b16 %v267, %v265
    %v276 = vpack.c.b16 %v270, %v268
    %v277 = vpack.c.b16 %v271, %v269
    %vm284 = vcmask 392192
    %v286 = vsel %vm284, %v253, 0
    %288 = vmatprep.subr.bf16.mxu0 %v273
    %289 = vmatpush1.bf16.msra.mxu0 %v272
    %290 = vmatprep.subr.bf16.mxu0 %v275
    %291 = vmatpush1.bf16.msra.mxu0 %v274
    %292 = vmatprep.subr.bf16.mxu0 %v277
    %293 = vmatpush1.bf16.msra.mxu0 %v276
    %294 = vmatprep.subr.bf16.mxu0 0
    %295 = vmatpush1.bf16.msra.mxu0 0
    %296 = vmatprep.subr.bf16.mxu0 0
    %297 = vmatpush1.bf16.msra.mxu0 0
    %298 = vmatprep.subr.bf16.mxu0 0
    %299 = vmatpush1.bf16.msra.mxu0 0
    %300 = vmatprep.subr.bf16.mxu0 0
    %301 = vmatpush1.bf16.msra.mxu0 0
    %302 = vmatprep.subr.bf16.mxu0 0
    %303 = vmatpush1.bf16.msra.mxu0 0
    %304 = vmatprep.subr.bf16.mxu0 0
    %305 = vmatpush1.bf16.msra.mxu0 0
    %306 = vmatprep.subr.bf16.mxu0 0
    %307 = vmatpush1.bf16.msra.mxu0 0
    %308 = vmatprep.subr.bf16.mxu0 0
    %309 = vmatpush1.bf16.msra.mxu0 0
    %310 = vmatprep.subr.bf16.mxu0 0
    %311 = vmatpush1.bf16.msra.mxu0 0
    %312 = vmatprep.subr.bf16.mxu0 0
    %313 = vmatpush1.bf16.msra.mxu0 0
    %314 = vmatprep.subr.bf16.mxu0 0
    %315 = vmatpush1.bf16.msra.mxu0 0
    %316 = vmatprep.subr.bf16.mxu0 0
    %317 = vmatpush1.bf16.msra.mxu0 0
    %318 = vmatprep.subr.bf16.mxu0 0
    %319 = vmatpush1.bf16.msra.mxu0 0
    %320 = vmatprep.mubr.bf16.mxu0 0
    %321 = vmatmul.mubr.bf16.gmra.mrb[0].mxu0 %v286
    %v322 = vpop.f32.mrb[0].mxu0
    %v323 = vadd.f32 %v242, %v322
    %v324 = vpop.f32.mrb[0].mxu0
    %v325 = vadd.f32 %v242, %v324
    %v326 = vpop.f32.mrb[0].mxu0
    %v327 = vadd.f32 %v247, %v326
    %v328 = vpop.f32.mrb[0].mxu0
    %v329 = vadd.f32 %v247, %v328
    %330 = vdwg.mxu0
    %v331 = vmax.f32 %v323, 0.0
    %v332 = vmax.f32 %v325, 0.0
    %v333 = vmax.f32 %v327, 0.0
    %v334 = vmax.f32 %v329, 0.0
    %335 = vst [vmem:[%s4] sm:$0xff] %v331
    %336 = vst [vmem:[%s4 + $0x8] sm:$0xff] %v332
    %337 = vst [vmem:[%s4 + $0x10] sm:$0xf] %v333
    %338 = vst [vmem:[%s4 + $0x18] sm:$0xf] %v334
    // Predicated region
    $region14: #{fused_conv_add_relu.2} parent=1 // pred_check
      _
    $region15: #{fused_conv_add_relu.2} parent=1 // pred_check_branch
      %340 = sbr.rel (0) target = $region17
    $region16: #{fused_conv_add_relu.2} parent=1 // pred_region
      _
    $region17: #{fused_conv_add_relu.2} parent=1 // pred_fallthru
      _
    // Predicated region
    $region18: #{fused_conv_add_relu.2} parent=1 // pred_check
      _
    $region19: #{fused_conv_add_relu.2} parent=1 // pred_check_branch
      %342 = sbr.rel (0) target = $region21
    $region20: #{fused_conv_add_relu.2} parent=1 // pred_region
      _
    $region21: #{fused_conv_add_relu.2} parent=1 // pred_fallthru
      _

</llo_original>
